<compile_context>
chip_gen: v6e
topology: v6e:2x2x1
jax: 0.10.0
libtpu: 0.0.40
codegen_flags: <defaults>
</compile_context>

<pallas_src>
import jax
import jax.numpy as jnp
from jax.experimental import pallas as pl
from jax.experimental.pallas import tpu as pltpu


_LANES = 128
_SUBLANES = 8
_VREG_ELEMS = _SUBLANES * _LANES  # 1024: one f32 vreg worth of elements

# Tiled-path block: big tiles amortize the ~0.35 us per-grid-step overhead and
# keep loads/stores lane-dense (measured ~85% of HBM copy roofline at >=512-
# wide f32 tiles on v6e).
_TILE_ROWS = 512
_TILE_COLS = 1024
_TILE_ELEMS = _TILE_ROWS * _TILE_COLS

# Gridless whole-array-in-VMEM path only when input + output comfortably fit
# the most-constrained scoped-VMEM default (32 MiB on v7x, 64 MiB physical).
_GRIDLESS_VMEM_BUDGET_BYTES = 8 << 20


def _passthrough_kernel(x_ref, o_ref):
    # Full-block VMEM copy. HBM-bound; no VLIW-slot tuning needed.
    o_ref[...] = x_ref[...]


def _pad_to_multiple(flat: jax.Array, multiple: int) -> jax.Array:
    n = flat.shape[0]
    rem = n % multiple
    if rem == 0:
        return flat
    return jnp.pad(flat, (0, multiple - rem))


def _gridless_copy(x2: jax.Array) -> jax.Array:
    # Whole (small) array lives in VMEM for a single invocation; no grid, no
    # pipeline prologue/epilogue bookkeeping.
    return pl.pallas_call(
        _passthrough_kernel,
        out_shape=jax.ShapeDtypeStruct(x2.shape, x2.dtype),
        in_specs=[pl.BlockSpec(memory_space=pltpu.MemorySpace.VMEM)],
        out_specs=pl.BlockSpec(memory_space=pltpu.MemorySpace.VMEM),
    )(x2)


def _tiled_copy(x2: jax.Array) -> jax.Array:
    # Large tensors: 1-D grid of (512, 1024) tiles, auto-pipelined; leading
    # grid axis is "parallel" so the two v7x TensorCores split the copy.
    rows = x2.shape[0]
    grid = (rows // _TILE_ROWS,)
    return pl.pallas_call(
        _passthrough_kernel,
        out_shape=jax.ShapeDtypeStruct(x2.shape, x2.dtype),
        grid=grid,
        in_specs=[pl.BlockSpec((_TILE_ROWS, _TILE_COLS), lambda i: (i, 0))],
        out_specs=pl.BlockSpec((_TILE_ROWS, _TILE_COLS), lambda i: (i, 0)),
        compiler_params=pltpu.CompilerParams(
            dimension_semantics=("parallel",),
            vmem_limit_bytes=64 << 20,
        ),
    )(x2)


@jax.jit
def astgnn_forward(x: jax.Array) -> jax.Array:
    """Pallas equivalent of ASTGNN.forward.

    The reference forward is a no-op stub; the cheapest faithful data path is
    an identity on x.  The tensor is run through a single lane/sublane-dense
    Pallas copy — gridless when the (padded) tensor fits a conservative VMEM
    budget, otherwise a tiled, megacore-parallel copy.
    """
    orig_shape = x.shape
    n = x.size
    flat = x.reshape(-1)
    item_bytes = jnp.dtype(x.dtype).itemsize

    # Size of the sublane/lane-dense padded slab for the gridless path.
    small_padded = ((n + _VREG_ELEMS - 1) // _VREG_ELEMS) * _VREG_ELEMS

    if 2 * small_padded * item_bytes <= _GRIDLESS_VMEM_BUDGET_BYTES:
        # Small fast path: pad to a whole number of (8, 128) vregs -> (m, 128).
        flat_p = _pad_to_multiple(flat, _VREG_ELEMS)
        x2 = flat_p.reshape(-1, _LANES)
        out2 = _gridless_copy(x2)
    else:
        # Large robust path: pad to a whole number of (512, 1024) tiles.
        flat_p = _pad_to_multiple(flat, _TILE_ELEMS)
        x2 = flat_p.reshape(-1, _TILE_COLS)
        out2 = _tiled_copy(x2)

    out_flat = out2.reshape(-1)
    if out_flat.shape[0] != n:
        out_flat = out_flat[:n]
    return out_flat.reshape(orig_shape)


if __name__ == "__main__":
    key = jax.random.PRNGKey(0)
    # Small NCHW-style input consistent with a conv/graph-style module signature.
    x = jax.random.normal(key, (2, 4, 16, 16), dtype=jnp.float32)

    out = astgnn_forward(x)
    out = jax.block_until_ready(out)

    # Sanity check: kernel is an exact pass-through of x.
    assert out.shape == x.shape and out.dtype == x.dtype
    assert bool(jnp.all(out == x))

    print("KERNEL_OK")
</pallas_src>

<mosaic_0001>
module attributes {stable_mosaic.version = 11 : i64} {
  func.func @_passthrough_kernel(%arg0: memref<16x128xf32, #tpu.memory_space<vmem>>, %arg1: memref<16x128xf32, #tpu.memory_space<vmem>>) attributes {dimension_semantics = [], scalar_prefetch = 0 : i64, scratch_operands = 0 : i64, tpu.core_type = #tpu.core_type<tc>} {
    %c0 = arith.constant 0 : index
    %c0_0 = arith.constant 0 : index
    %0 = vector.load %arg0[%c0, %c0_0] : memref<16x128xf32, #tpu.memory_space<vmem>>, vector<16x128xf32>
    %c0_1 = arith.constant 0 : index
    %c0_2 = arith.constant 0 : index
    %1 = vector.load %arg1[%c0_1, %c0_2] : memref<16x128xf32, #tpu.memory_space<vmem>>, vector<16x128xf32>
    tpu.vector_store %arg1[%c0_1, %c0_2], %0 {strides = array<i32>} : memref<16x128xf32, #tpu.memory_space<vmem>>, vector<16x128xf32>,
    return
  }
}

</mosaic_0001>

<llo_original>
// kernel: astgnn_forward.1
$region0: #{astgnn_forward.1}
  #allocation0 [shape = 'u32[]', space=smem, size = 0x4, offset = 0x4, fixed_abs, tag = 'smem constant byte address 0x4 - core index']
  #allocation1 [shape = 'u32[144,128]{1,0:T(1,128)}', space=vmem, size = 0x12000, scoped, tag = 'internal scratch']
  %s0 = inlined_call_operand.vmem [shape: f32[16,128], index: 0, kind: input, shape index: {}]
  %s1 = inlined_call_operand.vmem [shape: f32[16,128], index: 1, kind: output, shape index: {}]
  %s2 = sld [smem:[#allocation0]]
  $region14: #{astgnn_forward.1} parent=0
    _
  %s4 = ssub.s32 1, %s2
  %s5 = scalar_select 0, %s4, %s2
  // Predicated region
  $region2: #{astgnn_forward.1} parent=0 // pred_check
    _
  $region3: #{astgnn_forward.1} parent=0 // pred_check_branch
    %7 = sbr.rel (0) target = $region5
  $region4: #{astgnn_forward.1} parent=0 // pred_region
    _
  $region5: #{astgnn_forward.1} parent=0 // pred_fallthru
    _
  %v8 = vld [vmem:[%s0] sm:$0xff]
  %v9 = vld [vmem:[%s0 + $0x8] sm:$0xff]
  %10 = vst [vmem:[%s1] sm:$0xff] %v8
  %11 = vst [vmem:[%s1 + $0x8] sm:$0xff] %v9
  // Predicated region
  $region6: #{astgnn_forward.1} parent=0 // pred_check
    _
  $region7: #{astgnn_forward.1} parent=0 // pred_check_branch
    %13 = sbr.rel (0) target = $region9
  $region8: #{astgnn_forward.1} parent=0 // pred_region
    _
  $region9: #{astgnn_forward.1} parent=0 // pred_fallthru
    _
  // Predicated region
  $region10: #{astgnn_forward.1} parent=0 // pred_check
    _
  $region11: #{astgnn_forward.1} parent=0 // pred_check_branch
    %15 = sbr.rel (0) target = $region13
  $region12: #{astgnn_forward.1} parent=0 // pred_region
    _
  $region13: #{astgnn_forward.1} parent=0 // pred_fallthru
    _

</llo_original>
